<compile_context>
chip_gen: v7x
topology: tpu7x:2x2x1
jax: 0.10.0
libtpu: 0.0.40
codegen_flags: <defaults>
</compile_context>

<pallas_src>
import numpy as np
import jax
import jax.numpy as jnp
from jax.experimental import pallas as pl
from jax.experimental.pallas import tpu as pltpu


# ----------------------------------------------------------------------------
# Fused Pallas kernel: all T reverse-diffusion steps in one pallas_call.
# Layout: time L=128 on the lane axis, channels E on sublanes.
# ----------------------------------------------------------------------------
def _fused_sampling_kernel(coef_ref,            # SMEM  f32[4*T] : c_z|c_x|std|lambda
                           init_z_ref,          # VMEM  f32[E, L]
                           eps_ref,             # VMEM  f32[1, E, L]  (step i)
                           w1_ref,              # VMEM  f32[H, E]
                           b1_ref,              # VMEM  f32[H, 1]
                           wl_ref,              # VMEM  f32[H, 1]
                           w2_ref,              # VMEM  f32[E, H]
                           b2_ref,              # VMEM  f32[E, 1]
                           out_ref):            # VMEM  f32[E, L]  (resident; carries z)
    i = pl.program_id(0)
    T = pl.num_programs(0)

    @pl.when(i == 0)
    def _():
        out_ref[...] = init_z_ref[...]

    c_z = coef_ref[i]
    c_x = coef_ref[T + i]
    std = coef_ref[2 * T + i]
    lam = coef_ref[3 * T + i]

    z = out_ref[...]                                              # (E, L)

    # function approximator with FiLM lambda conditioning.
    h = jnp.tanh(jnp.dot(w1_ref[...], z,
                         preferred_element_type=jnp.float32)
                 + b1_ref[...] + wl_ref[...] * lam)               # (H, L)
    x_hat = (jnp.dot(w2_ref[...], h,
                     preferred_element_type=jnp.float32)
             + b2_ref[...])                                       # (E, L)

    # posterior mean + noise injection (std == 0 at the last step) + clip.
    out_ref[...] = jnp.clip(c_z * z + c_x * x_hat + std * eps_ref[0],
                            -1.0, 1.0)


def diffusion_sample(coef_flat, init_z2d, eps_all, w1, b1, wl, w2, b2):
    T, E, L = eps_all.shape
    H = w1.shape[0]
    return pl.pallas_call(
        _fused_sampling_kernel,
        out_shape=jax.ShapeDtypeStruct((E, L), jnp.float32),
        grid_spec=pltpu.PrefetchScalarGridSpec(
            num_scalar_prefetch=1,                        # coef table -> SMEM
            grid=(T,),
            in_specs=[
                pl.BlockSpec((E, L), lambda i, c: (0, 0)),         # init_z (resident)
                pl.BlockSpec((1, E, L), lambda i, c: (i, 0, 0)),   # eps (per step)
                pl.BlockSpec((H, E), lambda i, c: (0, 0)),         # w1 (resident)
                pl.BlockSpec((H, 1), lambda i, c: (0, 0)),         # b1 (resident)
                pl.BlockSpec((H, 1), lambda i, c: (0, 0)),         # wl (resident)
                pl.BlockSpec((E, H), lambda i, c: (0, 0)),         # w2 (resident)
                pl.BlockSpec((E, 1), lambda i, c: (0, 0)),         # b2 (resident)
            ],
            out_specs=pl.BlockSpec((E, L), lambda i, c: (0, 0)),   # state carrier
        ),
        compiler_params=pltpu.CompilerParams(
            dimension_semantics=("arbitrary",)),          # strictly sequential chain
    )(coef_flat, init_z2d, eps_all, w1, b1, wl, w2, b2)


# ----------------------------------------------------------------------------
# Trace-time schedule (float64 numpy): per-step [c_z, c_x, std, lambda_t].
# ----------------------------------------------------------------------------
def _schedule_np(t):
    s = 0.008
    _t = (t + s) / (1.0 + s)
    alpha = np.cos(0.5 * np.pi * _t)
    alpha2 = np.square(alpha)
    sigma2 = 1.0 - alpha2
    sigma = np.sqrt(sigma2)
    lambd = np.log(alpha2 / sigma2)
    return alpha, sigma, lambd


def _log1mexp_np(x):
    return np.where(x > np.log(2.0),
                    np.log1p(-np.exp(-x)),
                    np.log(-np.expm1(-x)))


def build_schedule_table(T, gamma):
    i = np.arange(T, dtype=np.float64)
    t = 1.0 - i / T
    s = t - 1.0 / T
    alpha_t, sigma_t, lambd_t = _schedule_np(t)
    alpha_s, sigma_s, lambd_s = _schedule_np(s)
    d_lambd = lambd_t - lambd_s
    # Stable form of exp(d_lambd) * alpha_s / alpha_t: avoids dividing by the
    # near-zero alpha_t at the t = 1 endpoint.
    c_z = alpha_t * np.square(sigma_s) / (alpha_s * np.square(sigma_t))
    c_x = -np.expm1(d_lambd) * alpha_s
    log_e2 = _log1mexp_np(-d_lambd)
    log_sigma_st = log_e2 + 2.0 * np.log(sigma_s)
    log_sigma_ts = log_e2 + 2.0 * np.log(sigma_t)
    std = np.exp(((1.0 - gamma) * log_sigma_st + gamma * log_sigma_ts) * 0.5)
    std[-1] = 0.0                     # last step (index T-1): mean only
    # flat 1-D layout: [c_z(T) | c_x(T) | std(T) | lambda_t(T)]
    return np.concatenate([c_z, c_x, std, lambd_t]).astype(np.float32)


# ----------------------------------------------------------------------------
# Ancestral sampling (== Diffusion.forward semantics); one kernel dispatch.
# ----------------------------------------------------------------------------
def diffusion_forward(init_z, eps_all, params, gamma, T):
    """init_z: (1, E, L); eps_all: (T, E, L) pre-drawn per-step noise."""
    coef = jnp.asarray(build_schedule_table(T, gamma))             # (4*T,)
    out = diffusion_sample(coef, init_z[0], eps_all,
                           params["w1"], params["b1"], params["wl"],
                           params["w2"], params["b2"])
    return out[None]                                               # (1, E, L)


# ----------------------------------------------------------------------------
# Demo
# ----------------------------------------------------------------------------
if __name__ == "__main__":
    E, L, H, T = 8, 128, 32, 8       # electrodes, signal_length, hidden, steps
    gamma = 0.1

    key = jax.random.PRNGKey(0)
    k1, k2, k3, kz, keps = jax.random.split(key, 5)

    # Deterministic synthetic function-approximator parameters.
    params = {
        "w1": 0.1 * jax.random.normal(k1, (H, E), jnp.float32),
        "b1": jnp.zeros((H, 1), jnp.float32),
        "wl": 0.01 * jax.random.normal(k2, (H, 1), jnp.float32),
        "w2": 0.1 * jax.random.normal(k3, (E, H), jnp.float32),
        "b2": jnp.zeros((E, 1), jnp.float32),
    }

    # torch.normal(0, 1, (1, E, L))  /  pre-drawn per-step epsilon.
    init_z = jax.random.normal(kz, (1, E, L), jnp.float32)
    eps_all = jax.random.normal(keps, (T, E, L), jnp.float32)

    out = diffusion_forward(init_z, eps_all, params, gamma, T)
    out = jax.block_until_ready(out)
    assert out.shape == (1, E, L)
    assert bool(jnp.all(jnp.isfinite(out)))
    assert bool(jnp.all(jnp.abs(out) <= 1.0 + 1e-6))

    # Pure-numpy (float64) reference of the same fused computation.
    coef_np = build_schedule_table(T, gamma).astype(np.float64)
    c_z_np, c_x_np = coef_np[0:T], coef_np[T:2 * T]
    std_np, lam_np = coef_np[2 * T:3 * T], coef_np[3 * T:4 * T]
    w1_np = np.asarray(params["w1"], np.float64)
    b1_np = np.asarray(params["b1"], np.float64)
    wl_np = np.asarray(params["wl"], np.float64)
    w2_np = np.asarray(params["w2"], np.float64)
    b2_np = np.asarray(params["b2"], np.float64)
    z_ref = np.asarray(init_z[0], np.float64)
    eps_np = np.asarray(eps_all, np.float64)
    for i in range(T):
        h = np.tanh(w1_np @ z_ref + b1_np + wl_np * lam_np[i])
        x_hat = w2_np @ h + b2_np
        z_ref = np.clip(c_z_np[i] * z_ref + c_x_np[i] * x_hat
                        + std_np[i] * eps_np[i], -1.0, 1.0)
    err = float(np.max(np.abs(np.asarray(out[0], np.float64) - z_ref)))
    assert err < 2e-3, f"mismatch vs reference: {err}"

    print("KERNEL_OK")
</pallas_src>

<mosaic_0001>
module attributes {stable_mosaic.version = 11 : i64} {
  func.func @_fused_sampling_kernel(%arg0: i32, %arg1: memref<32xf32, #tpu.memory_space<smem>>, %arg2: memref<8x128xf32, #tpu.memory_space<vmem>>, %arg3: memref<1x8x128xf32, #tpu.memory_space<vmem>>, %arg4: memref<32x8xf32, #tpu.memory_space<vmem>>, %arg5: memref<32x1xf32, #tpu.memory_space<vmem>>, %arg6: memref<32x1xf32, #tpu.memory_space<vmem>>, %arg7: memref<8x32xf32, #tpu.memory_space<vmem>>, %arg8: memref<8x1xf32, #tpu.memory_space<vmem>>, %arg9: memref<8x128xf32, #tpu.memory_space<vmem>>) attributes {dimension_semantics = [#tpu.dimension_semantics<arbitrary>], iteration_bounds = array<i64: 8>, scalar_prefetch = 1 : i64, scratch_operands = 0 : i64, tpu.core_type = #tpu.core_type<tc>, window_params = [{pipeline_mode = #tpu.pipeline_mode<synchronous>, transform_indices = @transform_0, window_bounds = array<i64: 8, 128>}, {transform_indices = @transform_1, window_bounds = array<i64: 1, 8, 128>}, {pipeline_mode = #tpu.pipeline_mode<synchronous>, transform_indices = @transform_2, window_bounds = array<i64: 32, 8>}, {pipeline_mode = #tpu.pipeline_mode<synchronous>, transform_indices = @transform_3, window_bounds = array<i64: 32, 1>}, {pipeline_mode = #tpu.pipeline_mode<synchronous>, transform_indices = @transform_4, window_bounds = array<i64: 32, 1>}, {pipeline_mode = #tpu.pipeline_mode<synchronous>, transform_indices = @transform_5, window_bounds = array<i64: 8, 32>}, {pipeline_mode = #tpu.pipeline_mode<synchronous>, transform_indices = @transform_6, window_bounds = array<i64: 8, 1>}, {pipeline_mode = #tpu.pipeline_mode<synchronous>, transform_indices = @transform_7, window_bounds = array<i64: 8, 128>}]} {
    %c0_i32 = arith.constant 0 : i32
    %0 = arith.cmpi eq, %arg0, %c0_i32 : i32
    %1 = arith.extui %0 : i1 to i32
    %c0_i32_0 = arith.constant 0 : i32
    %2 = arith.cmpi ne, %1, %c0_i32_0 : i32
    scf.if %2 {
      %c0_20 = arith.constant 0 : index
      %c0_21 = arith.constant 0 : index
      %46 = vector.load %arg2[%c0_20, %c0_21] : memref<8x128xf32, #tpu.memory_space<vmem>>, vector<8x128xf32>
      %c0_22 = arith.constant 0 : index
      %c0_23 = arith.constant 0 : index
      %47 = vector.load %arg9[%c0_22, %c0_23] : memref<8x128xf32, #tpu.memory_space<vmem>>, vector<8x128xf32>
      tpu.vector_store %arg9[%c0_22, %c0_23], %46 {strides = array<i32>} : memref<8x128xf32, #tpu.memory_space<vmem>>, vector<8x128xf32>,
    } else {
    }
    %3 = arith.index_cast %arg0 : i32 to index
    %4 = memref.load %arg1[%3] : memref<32xf32, #tpu.memory_space<smem>>
    %c8_i32 = arith.constant 8 : i32
    %5 = arith.addi %c8_i32, %arg0 : i32
    %6 = arith.index_cast %5 : i32 to index
    %7 = memref.load %arg1[%6] : memref<32xf32, #tpu.memory_space<smem>>
    %c16_i32 = arith.constant 16 : i32
    %8 = arith.addi %c16_i32, %arg0 : i32
    %9 = arith.index_cast %8 : i32 to index
    %10 = memref.load %arg1[%9] : memref<32xf32, #tpu.memory_space<smem>>
    %c24_i32 = arith.constant 24 : i32
    %11 = arith.addi %c24_i32, %arg0 : i32
    %12 = arith.index_cast %11 : i32 to index
    %13 = memref.load %arg1[%12] : memref<32xf32, #tpu.memory_space<smem>>
    %c0 = arith.constant 0 : index
    %c0_1 = arith.constant 0 : index
    %14 = vector.load %arg9[%c0, %c0_1] : memref<8x128xf32, #tpu.memory_space<vmem>>, vector<8x128xf32>
    %c0_2 = arith.constant 0 : index
    %c0_3 = arith.constant 0 : index
    %15 = vector.load %arg4[%c0_2, %c0_3] : memref<32x8xf32, #tpu.memory_space<vmem>>, vector<32x8xf32>
    %cst = arith.constant dense<0.000000e+00> : vector<32x128xf32>
    %16 = tpu.matmul %15, %14, %cst {dimension_numbers = #tpu.dot_dimension_numbers<[1], [0], [0], [1], [0, 0, 1, 1], [], []>} : vector<32x8xf32>, vector<8x128xf32>, vector<32x128xf32> -> vector<32x128xf32>
    %c0_4 = arith.constant 0 : index
    %c0_5 = arith.constant 0 : index
    %17 = vector.load %arg5[%c0_4, %c0_5] : memref<32x1xf32, #tpu.memory_space<vmem>>, vector<32x1xf32>
    %18 = vector.broadcast %17 : vector<32x1xf32> to vector<32x128xf32>
    %19 = arith.addf %16, %18 : vector<32x128xf32>
    %c0_6 = arith.constant 0 : index
    %c0_7 = arith.constant 0 : index
    %20 = vector.load %arg6[%c0_6, %c0_7] : memref<32x1xf32, #tpu.memory_space<vmem>>, vector<32x1xf32>
    %21 = vector.broadcast %13 : f32 to vector<32x1xf32>
    %22 = arith.mulf %20, %21 : vector<32x1xf32>
    %23 = vector.broadcast %22 : vector<32x1xf32> to vector<32x128xf32>
    %24 = arith.addf %19, %23 : vector<32x128xf32>
    %25 = math.tanh %24 : vector<32x128xf32>
    %c0_8 = arith.constant 0 : index
    %c0_9 = arith.constant 0 : index
    %26 = vector.load %arg7[%c0_8, %c0_9] : memref<8x32xf32, #tpu.memory_space<vmem>>, vector<8x32xf32>
    %cst_10 = arith.constant dense<0.000000e+00> : vector<8x128xf32>
    %27 = tpu.matmul %26, %25, %cst_10 {dimension_numbers = #tpu.dot_dimension_numbers<[1], [0], [0], [1], [0, 0, 1, 1], [], []>} : vector<8x32xf32>, vector<32x128xf32>, vector<8x128xf32> -> vector<8x128xf32>
    %c0_11 = arith.constant 0 : index
    %c0_12 = arith.constant 0 : index
    %28 = vector.load %arg8[%c0_11, %c0_12] : memref<8x1xf32, #tpu.memory_space<vmem>>, vector<8x1xf32>
    %29 = vector.broadcast %28 : vector<8x1xf32> to vector<8x128xf32>
    %30 = arith.addf %27, %29 : vector<8x128xf32>
    %31 = vector.broadcast %4 : f32 to vector<8x128xf32>
    %32 = arith.mulf %31, %14 : vector<8x128xf32>
    %33 = vector.broadcast %7 : f32 to vector<8x128xf32>
    %34 = arith.mulf %33, %30 : vector<8x128xf32>
    %35 = arith.addf %32, %34 : vector<8x128xf32>
    %c0_13 = arith.constant 0 : index
    %c0_14 = arith.constant 0 : index
    %c0_15 = arith.constant 0 : index
    %36 = vector.load %arg3[%c0_13, %c0_14, %c0_15] : memref<1x8x128xf32, #tpu.memory_space<vmem>>, vector<1x8x128xf32>
    %37 = vector.shape_cast %36 : vector<1x8x128xf32> to vector<8x128xf32>
    %38 = vector.broadcast %10 : f32 to vector<8x128xf32>
    %39 = arith.mulf %38, %37 : vector<8x128xf32>
    %40 = arith.addf %35, %39 : vector<8x128xf32>
    %cst_16 = arith.constant -1.000000e+00 : f32
    %cst_17 = arith.constant 1.000000e+00 : f32
    %41 = vector.broadcast %cst_16 : f32 to vector<8x128xf32>
    %42 = arith.maximumf %41, %40 : vector<8x128xf32>
    %43 = vector.broadcast %cst_17 : f32 to vector<8x128xf32>
    %44 = arith.minimumf %43, %42 : vector<8x128xf32>
    %c0_18 = arith.constant 0 : index
    %c0_19 = arith.constant 0 : index
    %45 = vector.load %arg9[%c0_18, %c0_19] : memref<8x128xf32, #tpu.memory_space<vmem>>, vector<8x128xf32>
    tpu.vector_store %arg9[%c0_18, %c0_19], %44 {strides = array<i32>} : memref<8x128xf32, #tpu.memory_space<vmem>>, vector<8x128xf32>,
    return
  }
  func.func @transform_0(%arg0: i32, %arg1: memref<32xf32, #tpu.memory_space<smem>>) -> (i32, i32) {
    %c0_i32 = arith.constant 0 : i32
    %c0_i32_0 = arith.constant 0 : i32
    %c0_i32_1 = arith.constant 0 : i32
    return %c0_i32, %c0_i32_0 : i32, i32
  }
  func.func @transform_1(%arg0: i32, %arg1: memref<32xf32, #tpu.memory_space<smem>>) -> (i32, i32, i32) {
    %c0_i32 = arith.constant 0 : i32
    %c0_i32_0 = arith.constant 0 : i32
    %c0_i32_1 = arith.constant 0 : i32
    return %arg0, %c0_i32, %c0_i32_0 : i32, i32, i32
  }
  func.func @transform_2(%arg0: i32, %arg1: memref<32xf32, #tpu.memory_space<smem>>) -> (i32, i32) {
    %c0_i32 = arith.constant 0 : i32
    %c0_i32_0 = arith.constant 0 : i32
    %c0_i32_1 = arith.constant 0 : i32
    return %c0_i32, %c0_i32_0 : i32, i32
  }
  func.func @transform_3(%arg0: i32, %arg1: memref<32xf32, #tpu.memory_space<smem>>) -> (i32, i32) {
    %c0_i32 = arith.constant 0 : i32
    %c0_i32_0 = arith.constant 0 : i32
    %c0_i32_1 = arith.constant 0 : i32
    return %c0_i32, %c0_i32_0 : i32, i32
  }
  func.func @transform_4(%arg0: i32, %arg1: memref<32xf32, #tpu.memory_space<smem>>) -> (i32, i32) {
    %c0_i32 = arith.constant 0 : i32
    %c0_i32_0 = arith.constant 0 : i32
    %c0_i32_1 = arith.constant 0 : i32
    return %c0_i32, %c0_i32_0 : i32, i32
  }
  func.func @transform_5(%arg0: i32, %arg1: memref<32xf32, #tpu.memory_space<smem>>) -> (i32, i32) {
    %c0_i32 = arith.constant 0 : i32
    %c0_i32_0 = arith.constant 0 : i32
    %c0_i32_1 = arith.constant 0 : i32
    return %c0_i32, %c0_i32_0 : i32, i32
  }
  func.func @transform_6(%arg0: i32, %arg1: memref<32xf32, #tpu.memory_space<smem>>) -> (i32, i32) {
    %c0_i32 = arith.constant 0 : i32
    %c0_i32_0 = arith.constant 0 : i32
    %c0_i32_1 = arith.constant 0 : i32
    return %c0_i32, %c0_i32_0 : i32, i32
  }
  func.func @transform_7(%arg0: i32, %arg1: memref<32xf32, #tpu.memory_space<smem>>) -> (i32, i32) {
    %c0_i32 = arith.constant 0 : i32
    %c0_i32_0 = arith.constant 0 : i32
    %c0_i32_1 = arith.constant 0 : i32
    return %c0_i32, %c0_i32_0 : i32, i32
  }
}

</mosaic_0001>

<llo_original>
// kernel: tpu_custom_call.1
$region0: #{tpu_custom_call.1}
  #allocation0 [shape = 'u32[]', space=smem, size = 0x4, offset = 0x4, fixed_abs, tag = 'smem constant byte address 0x4 - core index']
  #allocation1 [shape = 'u32[144,128]{1,0:T(1,128)}', space=vmem, size = 0x12000, scoped, tag = 'internal scratch']
  #allocation2 [shape = 's32[1]{0}', space=sflag, size = 0x4, scoped, tag = 'scoped memory for tpu_custom_call.1']
  #allocation3 [shape = 'u8[512]{0}', space=smem, size = 0x200, scoped, tag = 'prefetched SMEM operand 0']
  %s0 = inlined_call_operand.vmem [shape: f32[32], index: 0, kind: input, shape index: {}]
  %s1 = inlined_call_operand.vmem [shape: f32[8,128], index: 1, kind: input, shape index: {}]
  %s2 = inlined_call_operand.vmem [shape: f32[8,8,128], index: 2, kind: input, shape index: {}]
  %s3 = inlined_call_operand.vmem [shape: f32[32,8], index: 3, kind: input, shape index: {}]
  %s4 = inlined_call_operand.vmem [shape: f32[32,1], index: 4, kind: input, shape index: {}]
  %s5 = inlined_call_operand.vmem [shape: f32[32,1], index: 5, kind: input, shape index: {}]
  %s6 = inlined_call_operand.vmem [shape: f32[8,32], index: 6, kind: input, shape index: {}]
  %s7 = inlined_call_operand.vmem [shape: f32[8,1], index: 7, kind: input, shape index: {}]
  %s8 = inlined_call_operand.hbm [shape: f32[8,128], index: 8, kind: output, shape index: {}]
  %s9 = sld [smem:[#allocation0]]
  $region65: #{tpu_custom_call.1} parent=0
    _
  %s11 = ssub.s32 1, %s9
  %s12 = scalar_select 0, %s11, %s9
  %s13 = sshll.u32 %s0, 4
  %s14 = int_to_ptr.vmem [resolvable:$true] %s13
  %16 = dma.vmem_to_smem %s14, 16, [#allocation3], [#allocation2]
  %17 = dma.done [#allocation2], 16
  %18 = sfence
  $region1: #{tpu_custom_call.1} parent=0
    #allocation4 [shape = 'u8[4096]{0}', space=vmem, size = 0x1000, scoped, tag = 'output window, operand 0, single buffered']
    #allocation5 [shape = 's32[2]{0}', space=sflag, size = 0x8, scoped, tag = 'scoped memory for tpu_custom_call.1']
    %19 = vsyncpa [#allocation5], 0
    loop: start=0, step=1, limit=10
    $region2: #{tpu_custom_call.1} parent=1 // loop_pre_header
      _
    $region3: #{tpu_custom_call.1} parent=1 // loop_header
      %s21 = sphi 0, %s25
      %p22 = scmp.ge.s32.totalorder %s21, 10
      %s29 = sphi 0, %s29
      %s31 = sphi 0, %s29
      %s32 = sphi 0, %s31
      %s46 = sphi 0, %s32
      %s52 = sphi 0, %s54
      %s55 = sphi 0, %s52
      %s56 = sphi 0, %s55
      %s72 = sphi 0, %s56
      %s76 = sphi 0, %s76
      %s78 = sphi 0, %s76
      %s79 = sphi 0, %s78
      %s93 = sphi 0, %s79
      %s97 = sphi 0, %s97
      %s99 = sphi 0, %s97
      %s100 = sphi 0, %s99
      %s114 = sphi 0, %s100
      %s118 = sphi 0, %s118
      %s120 = sphi 0, %s118
      %s121 = sphi 0, %s120
      %s135 = sphi 0, %s121
      %s139 = sphi 0, %s139
      %s141 = sphi 0, %s139
      %s142 = sphi 0, %s141
      %s156 = sphi 0, %s142
      %s160 = sphi 0, %s160
      %s162 = sphi 0, %s160
      %s163 = sphi 0, %s162
      %s177 = sphi 0, %s163
      %s181 = sphi 0, %s181
      %s183 = sphi 0, %s181
      %s184 = sphi 0, %s183
      %s198 = sphi 0, %s184
    $region4: #{tpu_custom_call.1} parent=1 // loop_header_branch
      %24 = sbr.rel (%p22) target = $region8
    $region5: #{tpu_custom_call.1} parent=1 // loop_body
      %s26 = ssub.s32 %s21, 1
      %s27 = ssub.s32 %s21, 2
      %s28 = sadd.s32 %s21, 1
      %s30 = sadd.s32 %s29, 1
      %p33 = scmp.eq.s32.totalorder %s21, 7
      %p34 = scmp.ne.s32.totalorder %s29, %s31
      %p35 = scmp.eq.s32.totalorder %s21, 0
      %p36 = por %p34, %p35
      %p37 = scmp.ne.s32.totalorder %s29, %s31
      %p38 = scmp.eq.s32.totalorder %s26, 7
      %p39 = por %p37, %p38
      %p40 = scmp.ne.s32.totalorder %s31, %s32
      %p41 = scmp.eq.s32.totalorder %s26, 0
      %p42 = por %p40, %p41
      %p43 = scmp.ne.s32.totalorder %s31, %s32
      %p44 = scmp.eq.s32.totalorder %s27, 7
      %p45 = por %p43, %p44
      %p47 = scmp.ne.s32.totalorder %s32, %s46
      %p48 = scmp.eq.s32.totalorder %s27, 0
      %p49 = por %p47, %p48
      %s50 = ssub.s32 %s21, %s28
      %p51 = scmp.eq.s32.totalorder %s50, 0
      %s53 = sadd.s32 %s52, 1
      %s54 = scalar_select %p51, %s52, %s53
      %p57 = pneg %p51
      %p58 = scmp.eq.s32.totalorder %s21, 7
      %p59 = por %p57, %p58
      %p60 = scmp.ne.s32.totalorder %s52, %s55
      %p61 = scmp.eq.s32.totalorder %s21, 0
      %p62 = por %p60, %p61
      %p63 = scmp.ne.s32.totalorder %s52, %s55
      %p64 = scmp.eq.s32.totalorder %s26, 7
      %p65 = por %p63, %p64
      %p66 = scmp.ne.s32.totalorder %s55, %s56
      %p67 = scmp.eq.s32.totalorder %s26, 0
      %p68 = por %p66, %p67
      %p69 = scmp.ne.s32.totalorder %s55, %s56
      %p70 = scmp.eq.s32.totalorder %s27, 7
      %p71 = por %p69, %p70
      %p73 = scmp.ne.s32.totalorder %s56, %s72
      %p74 = scmp.eq.s32.totalorder %s27, 0
      %p75 = por %p73, %p74
      %s77 = sadd.s32 %s76, 1
      %p80 = scmp.eq.s32.totalorder %s21, 7
      %p81 = scmp.ne.s32.totalorder %s76, %s78
      %p82 = scmp.eq.s32.totalorder %s21, 0
      %p83 = por %p81, %p82
      %p84 = scmp.ne.s32.totalorder %s76, %s78
      %p85 = scmp.eq.s32.totalorder %s26, 7
      %p86 = por %p84, %p85
      %p87 = scmp.ne.s32.totalorder %s78, %s79
      %p88 = scmp.eq.s32.totalorder %s26, 0
      %p89 = por %p87, %p88
      %p90 = scmp.ne.s32.totalorder %s78, %s79
      %p91 = scmp.eq.s32.totalorder %s27, 7
      %p92 = por %p90, %p91
      %p94 = scmp.ne.s32.totalorder %s79, %s93
      %p95 = scmp.eq.s32.totalorder %s27, 0
      %p96 = por %p94, %p95
      %s98 = sadd.s32 %s97, 1
      %p101 = scmp.eq.s32.totalorder %s21, 7
      %p102 = scmp.ne.s32.totalorder %s97, %s99
      %p103 = scmp.eq.s32.totalorder %s21, 0
      %p104 = por %p102, %p103
      %p105 = scmp.ne.s32.totalorder %s97, %s99
      %p106 = scmp.eq.s32.totalorder %s26, 7
      %p107 = por %p105, %p106
      %p108 = scmp.ne.s32.totalorder %s99, %s100
      %p109 = scmp.eq.s32.totalorder %s26, 0
      %p110 = por %p108, %p109
      %p111 = scmp.ne.s32.totalorder %s99, %s100
      %p112 = scmp.eq.s32.totalorder %s27, 7
      %p113 = por %p111, %p112
      %p115 = scmp.ne.s32.totalorder %s100, %s114
      %p116 = scmp.eq.s32.totalorder %s27, 0
      %p117 = por %p115, %p116
      %s119 = sadd.s32 %s118, 1
      %p122 = scmp.eq.s32.totalorder %s21, 7
      %p123 = scmp.ne.s32.totalorder %s118, %s120
      %p124 = scmp.eq.s32.totalorder %s21, 0
      %p125 = por %p123, %p124
      %p126 = scmp.ne.s32.totalorder %s118, %s120
      %p127 = scmp.eq.s32.totalorder %s26, 7
      %p128 = por %p126, %p127
      %p129 = scmp.ne.s32.totalorder %s120, %s121
      %p130 = scmp.eq.s32.totalorder %s26, 0
      %p131 = por %p129, %p130
      %p132 = scmp.ne.s32.totalorder %s120, %s121
      %p133 = scmp.eq.s32.totalorder %s27, 7
      %p134 = por %p132, %p133
      %p136 = scmp.ne.s32.totalorder %s121, %s135
      %p137 = scmp.eq.s32.totalorder %s27, 0
      %p138 = por %p136, %p137
      %s140 = sadd.s32 %s139, 1
      %p143 = scmp.eq.s32.totalorder %s21, 7
      %p144 = scmp.ne.s32.totalorder %s139, %s141
      %p145 = scmp.eq.s32.totalorder %s21, 0
      %p146 = por %p144, %p145
      %p147 = scmp.ne.s32.totalorder %s139, %s141
      %p148 = scmp.eq.s32.totalorder %s26, 7
      %p149 = por %p147, %p148
      %p150 = scmp.ne.s32.totalorder %s141, %s142
      %p151 = scmp.eq.s32.totalorder %s26, 0
      %p152 = por %p150, %p151
      %p153 = scmp.ne.s32.totalorder %s141, %s142
      %p154 = scmp.eq.s32.totalorder %s27, 7
      %p155 = por %p153, %p154
      %p157 = scmp.ne.s32.totalorder %s142, %s156
      %p158 = scmp.eq.s32.totalorder %s27, 0
      %p159 = por %p157, %p158
      %s161 = sadd.s32 %s160, 1
      %p164 = scmp.eq.s32.totalorder %s21, 7
      %p165 = scmp.ne.s32.totalorder %s160, %s162
      %p166 = scmp.eq.s32.totalorder %s21, 0
      %p167 = por %p165, %p166
      %p168 = scmp.ne.s32.totalorder %s160, %s162
      %p169 = scmp.eq.s32.totalorder %s26, 7
      %p170 = por %p168, %p169
      %p171 = scmp.ne.s32.totalorder %s162, %s163
      %p172 = scmp.eq.s32.totalorder %s26, 0
      %p173 = por %p171, %p172
      %p174 = scmp.ne.s32.totalorder %s162, %s163
      %p175 = scmp.eq.s32.totalorder %s27, 7
      %p176 = por %p174, %p175
      %p178 = scmp.ne.s32.totalorder %s163, %s177
      %p179 = scmp.eq.s32.totalorder %s27, 0
      %p180 = por %p178, %p179
      %s182 = sadd.s32 %s181, 1
      %p185 = scmp.eq.s32.totalorder %s21, 7
      %p186 = scmp.ne.s32.totalorder %s181, %s183
      %p187 = scmp.eq.s32.totalorder %s21, 0
      %p188 = por %p186, %p187
      %p189 = scmp.ne.s32.totalorder %s181, %s183
      %p190 = scmp.eq.s32.totalorder %s26, 7
      %p191 = por %p189, %p190
      %p192 = scmp.ne.s32.totalorder %s183, %s184
      %p193 = scmp.eq.s32.totalorder %s26, 0
      %p194 = por %p192, %p193
      %p195 = scmp.ne.s32.totalorder %s183, %s184
      %p196 = scmp.eq.s32.totalorder %s27, 7
      %p197 = por %p195, %p196
      %p199 = scmp.ne.s32.totalorder %s184, %s198
      %p200 = scmp.eq.s32.totalorder %s27, 0
      %p201 = por %p199, %p200
      %p202 = scmp.le.s32.totalorder 1, %s21
      %p203 = scmp.lt.s32.totalorder %s21, 9
      %p204 = pnand %p202, %p203
      %p205 = pneg %p204
      // Predicated region
      $region9: #{tpu_custom_call.1} parent=5 // pred_check
        _
      $region10: #{tpu_custom_call.1} parent=5 // pred_check_branch
        %207 = sbr.rel (%p204) target = $region12
      $region11: #{tpu_custom_call.1} parent=5 // pred_region
        %s208 = ssub.s32 %s21, 1
        // Predicated region
        $region13: #{tpu_custom_call.1} parent=11 // pred_check
          %p209 = pneg %p42
        $region14: #{tpu_custom_call.1} parent=11 // pred_check_branch
          %211 = sbr.rel (%p209) target = $region16
        $region15: #{tpu_custom_call.1} parent=11 // pred_region
          _
        $region16: #{tpu_custom_call.1} parent=11 // pred_fallthru
          _
        // Predicated region
        $region17: #{tpu_custom_call.1} parent=11 // pred_check
          %p212 = pneg %p89
        $region18: #{tpu_custom_call.1} parent=11 // pred_check_branch
          %214 = sbr.rel (%p212) target = $region20
        $region19: #{tpu_custom_call.1} parent=11 // pred_region
          _
        $region20: #{tpu_custom_call.1} parent=11 // pred_fallthru
          _
        // Predicated region
        $region21: #{tpu_custom_call.1} parent=11 // pred_check
          %p215 = pneg %p110
        $region22: #{tpu_custom_call.1} parent=11 // pred_check_branch
          %217 = sbr.rel (%p215) target = $region24
        $region23: #{tpu_custom_call.1} parent=11 // pred_region
          _
        $region24: #{tpu_custom_call.1} parent=11 // pred_fallthru
          _
        // Predicated region
        $region25: #{tpu_custom_call.1} parent=11 // pred_check
          %p218 = pneg %p131
        $region26: #{tpu_custom_call.1} parent=11 // pred_check_branch
          %220 = sbr.rel (%p218) target = $region28
        $region27: #{tpu_custom_call.1} parent=11 // pred_region
          _
        $region28: #{tpu_custom_call.1} parent=11 // pred_fallthru
          _
        // Predicated region
        $region29: #{tpu_custom_call.1} parent=11 // pred_check
          %p221 = pneg %p152
        $region30: #{tpu_custom_call.1} parent=11 // pred_check_branch
          %223 = sbr.rel (%p221) target = $region32
        $region31: #{tpu_custom_call.1} parent=11 // pred_region
          _
        $region32: #{tpu_custom_call.1} parent=11 // pred_fallthru
          _
        // Predicated region
        $region33: #{tpu_custom_call.1} parent=11 // pred_check
          %p224 = pneg %p173
        $region34: #{tpu_custom_call.1} parent=11 // pred_check_branch
          %226 = sbr.rel (%p224) target = $region36
        $region35: #{tpu_custom_call.1} parent=11 // pred_region
          _
        $region36: #{tpu_custom_call.1} parent=11 // pred_fallthru
          _
      $region12: #{tpu_custom_call.1} parent=5 // pred_fallthru
        _
      %p227 = scmp.lt.s32.totalorder %s21, 8
      // Predicated region
      $region37: #{tpu_custom_call.1} parent=5 // pred_check
        %p228 = pneg %p227
      $region38: #{tpu_custom_call.1} parent=5 // pred_check_branch
        %230 = sbr.rel (%p228) target = $region40
      $region39: #{tpu_custom_call.1} parent=5 // pred_region
        // Predicated region
        $region41: #{tpu_custom_call.1} parent=39 // pred_check
          %p231 = pneg %p62
        $region42: #{tpu_custom_call.1} parent=39 // pred_check_branch
          %233 = sbr.rel (%p231) target = $region44
        $region43: #{tpu_custom_call.1} parent=39 // pred_region
          %p234 = scmp.lt.s32.totalorder %s21, 7
          %s235 = scalar_select %p234, %s21, 7
          %s236 = smul.addr %s235, 8
          %s237 = scalar_lea.vmem %s2, %s236
        $region44: #{tpu_custom_call.1} parent=39 // pred_fallthru
          _
      $region40: #{tpu_custom_call.1} parent=5 // pred_fallthru
        _
      %p238 = scmp.le.s32.totalorder 1, %s21
      %p239 = scmp.lt.s32.totalorder %s21, 9
      %p240 = pnand %p238, %p239
      %p241 = pneg %p240
      // Predicated region
      $region45: #{tpu_custom_call.1} parent=5 // pred_check
        _
      $region46: #{tpu_custom_call.1} parent=5 // pred_check_branch
        %243 = sbr.rel (%p240) target = $region48
      $region47: #{tpu_custom_call.1} parent=5 // pred_region
        %s244 = ssub.s32 %s21, 1
        %p245 = pneg %p42
        %p246 = pneg %p39
        %p247 = scmp.lt.s32.totalorder %s26, 7
        %s248 = scalar_select %p247, %s26, 7
        %s249 = smul.addr %s248, 8
        %s250 = scalar_lea.vmem %s2, %s249
        %p251 = pneg %p68
        %p252 = pneg %p65
        %p253 = pneg %p89
        %p254 = pneg %p86
        %p255 = pneg %p110
        %p256 = pneg %p107
        %p257 = pneg %p131
        %p258 = pneg %p128
        %p259 = pneg %p152
        %p260 = pneg %p149
        %p261 = pneg %p173
        %p262 = pneg %p170
        %p263 = pneg %p194
        %p264 = pneg %p191
        %p265 = scmp.lt.s32.totalorder %s26, 7
        %s266 = scalar_select %p265, %s26, 7
        %s267 = smul.addr %s266, 8
        %s268 = scalar_lea.vmem %s2, %s267
        %p269 = scmp.eq.s32.totalorder %s26, 0
        // Predicated region
        $region49: #{tpu_custom_call.1} parent=47 // pred_check
          %p270 = pneg %p269
        $region50: #{tpu_custom_call.1} parent=47 // pred_check_branch
          %272 = sbr.rel (%p270) target = $region52
        $region51: #{tpu_custom_call.1} parent=47 // pred_region
          %v273 = vld [vmem:[%s1] sm:$0xff]
          %274 = vst [vmem:[#allocation4] sm:$0xff] %v273
        $region52: #{tpu_custom_call.1} parent=47 // pred_fallthru
          _
        %s275 = sld [smem:[#allocation3 + %s26]]
        %s276 = sadd.s32 %s26, 8
        %s277 = sld [smem:[#allocation3 + %s276]]
        %s278 = sadd.s32 %s26, 16
        %s279 = sld [smem:[#allocation3 + %s278]]
        %s280 = sadd.s32 %s26, 24
        %s281 = sld [smem:[#allocation3 + %s280]]
        %v282 = vld [vmem:[#allocation4] sm:$0xff]
        %v283 = vld [vmem:[%s3] sm:$0xff]
        %v284 = vld [vmem:[%s3 + $0x8] sm:$0xff]
        %v285 = vld [vmem:[%s3 + $0x10] sm:$0xff]
        %v286 = vld [vmem:[%s3 + $0x18] sm:$0xff]
        %v287 = vld [vmem:[%s4] sm:$0xff]
        %v288 = vld [vmem:[%s4 + $0x8] sm:$0xff]
        %v289 = vld [vmem:[%s4 + $0x10] sm:$0xff]
        %v290 = vld [vmem:[%s4 + $0x18] sm:$0xff]
        %292 = vset.pattern.permute.xlu0 0
        %293 = vperm.xlu0 %292, %v287
        %v294 = vpop.permute.xlu0 %293
        %297 = vset.pattern.permute.xlu0 0
        %298 = vperm.xlu0 %297, %v288
        %v299 = vpop.permute.xlu0 %298
        %302 = vset.pattern.permute.xlu0 0
        %303 = vperm.xlu0 %302, %v289
        %v304 = vpop.permute.xlu0 %303
        %307 = vset.pattern.permute.xlu0 0
        %308 = vperm.xlu0 %307, %v290
        %v309 = vpop.permute.xlu0 %308
        %vm311 = vcmask 64512
        %v313 = vsel %vm311, %v283, 0
        %v316 = vsel %vm311, %v284, 0
        %v319 = vsel %vm311, %v285, 0
        %v322 = vsel %vm311, %v286, 0
        %324 = vmatprep.subr.mxu0 0.0
        %325 = vmatpush1.msra.mxu0 %v282
        %326 = vmatprep.subr.mxu0 0.0
        %327 = vmatpush1.msra.mxu0 0.0
        %328 = vmatprep.subr.mxu0 0.0
        %329 = vmatpush1.msra.mxu0 0.0
        %330 = vmatprep.subr.mxu0 0.0
        %331 = vmatpush1.msra.mxu0 0.0
        %332 = vmatprep.subr.mxu0 0.0
        %333 = vmatpush1.msra.mxu0 0.0
        %334 = vmatprep.subr.mxu0 0.0
        %335 = vmatpush1.msra.mxu0 0.0
        %336 = vmatprep.subr.mxu0 0.0
        %337 = vmatpush1.msra.mxu0 0.0
        %338 = vmatprep.subr.mxu0 0.0
        %339 = vmatpush1.msra.mxu0 0.0
        %340 = vmatprep.subr.mxu0 0.0
        %341 = vmatpush1.msra.mxu0 0.0
        %342 = vmatprep.subr.mxu0 0.0
        %343 = vmatpush1.msra.mxu0 0.0
        %344 = vmatprep.subr.mxu0 0.0
        %345 = vmatpush1.msra.mxu0 0.0
        %346 = vmatprep.subr.mxu0 0.0
        %347 = vmatpush1.msra.mxu0 0.0
        %348 = vmatprep.subr.mxu0 0.0
        %349 = vmatpush1.msra.mxu0 0.0
        %350 = vmatprep.subr.mxu0 0.0
        %351 = vmatpush1.msra.mxu0 0.0
        %352 = vmatprep.subr.mxu0 0.0
        %353 = vmatpush1.msra.mxu0 0.0
        %354 = vmatprep.subr.mxu0 0.0
        %355 = vmatpush1.msra.mxu0 0.0
        %356 = vmatprep.subr.mxu0 0.0
        %357 = vmatpush1.msra.mxu0 0.0
        %358 = vmatprep.subr.mxu0 0.0
        %359 = vmatpush1.msra.mxu0 0.0
        %360 = vmatprep.subr.mxu0 0.0
        %361 = vmatpush1.msra.mxu0 0.0
        %362 = vmatprep.subr.mxu0 0.0
        %363 = vmatpush1.msra.mxu0 0.0
        %364 = vmatprep.subr.mxu0 0.0
        %365 = vmatpush1.msra.mxu0 0.0
        %366 = vmatprep.subr.mxu0 0.0
        %367 = vmatpush1.msra.mxu0 0.0
        %368 = vmatprep.subr.mxu0 0.0
        %369 = vmatpush1.msra.mxu0 0.0
        %370 = vmatprep.subr.mxu0 0.0
        %371 = vmatpush1.msra.mxu0 0.0
        %372 = vmatprep.subr.mxu0 0.0
        %373 = vmatpush1.msra.mxu0 0.0
        %374 = vmatprep.subr.mxu0 0.0
        %375 = vmatpush1.msra.mxu0 0.0
        %376 = vmatprep.subr.mxu0 0.0
        %377 = vmatpush1.msra.mxu0 0.0
        %378 = vmatprep.subr.mxu0 0.0
        %379 = vmatpush1.msra.mxu0 0.0
        %380 = vmatprep.subr.mxu0 0.0
        %381 = vmatpush1.msra.mxu0 0.0
        %382 = vmatprep.subr.mxu0 0.0
        %383 = vmatpush1.msra.mxu0 0.0
        %384 = vmatprep.subr.mxu0 0.0
        %385 = vmatpush1.msra.mxu0 0.0
        %386 = vmatprep.subr.mxu0 0.0
        %387 = vmatpush1.msra.mxu0 0.0
        %388 = vmatprep.mubr.f32.mxu0 0.0
        %389 = vmatmul.mubr.f32.gmra.mrb[0].mxu0 %v313
        %v390 = vpop.f32.mrb[0].mxu0
        %v391 = vadd.f32 %v294, %v390
        %v392 = vpop.f32.mrb[0].mxu0
        %393 = vmatprep.mubr.f32.mxu0 0.0
        %394 = vmatmul.mubr.f32.gmra.mrb[0].mxu0 %v316
        %v395 = vpop.f32.mrb[0].mxu0
        %v396 = vadd.f32 %v299, %v395
        %v397 = vpop.f32.mrb[0].mxu0
        %398 = vmatprep.mubr.f32.mxu0 0.0
        %399 = vmatmul.mubr.f32.gmra.mrb[0].mxu0 %v319
        %v400 = vpop.f32.mrb[0].mxu0
        %v401 = vadd.f32 %v304, %v400
        %v402 = vpop.f32.mrb[0].mxu0
        %403 = vmatprep.mubr.f32.mxu0 0.0
        %404 = vmatmul.mubr.f32.gmra.mrb[0].mxu0 %v322
        %v405 = vpop.f32.mrb[0].mxu0
        %v406 = vadd.f32 %v309, %v405
        %v407 = vpop.f32.mrb[0].mxu0
        %408 = vdwg.mxu0
        %v409 = vld [vmem:[%s5] sm:$0xff]
        %v410 = vld [vmem:[%s5 + $0x8] sm:$0xff]
        %v411 = vld [vmem:[%s5 + $0x10] sm:$0xff]
        %v412 = vld [vmem:[%s5 + $0x18] sm:$0xff]
        %v413 = vstv %s281
        %v414 = vmul.f32 %v409, %v413
        %v415 = vmul.f32 %v410, %v413
        %v416 = vmul.f32 %v411, %v413
        %v417 = vmul.f32 %v412, %v413
        %419 = vset.pattern.permute.xlu0 0
        %420 = vperm.xlu0 %419, %v414
        %v421 = vpop.permute.xlu0 %420
        %424 = vset.pattern.permute.xlu0 0
        %425 = vperm.xlu0 %424, %v415
        %v426 = vpop.permute.xlu0 %425
        %429 = vset.pattern.permute.xlu0 0
        %430 = vperm.xlu0 %429, %v416
        %v431 = vpop.permute.xlu0 %430
        %434 = vset.pattern.permute.xlu0 0
        %435 = vperm.xlu0 %434, %v417
        %v436 = vpop.permute.xlu0 %435
        %v438 = vadd.f32 %v391, %v421
        %v439 = vadd.f32 %v396, %v426
        %v440 = vadd.f32 %v401, %v431
        %v441 = vadd.f32 %v406, %v436
        %v442 = vtanh.pop %v438
        %v443 = vtanh.pop %v439
        %v444 = vtanh.pop %v440
        %v445 = vtanh.pop %v441
        %v446 = vld [vmem:[%s6] sm:$0xff]
        %v447 = vld [vmem:[%s7] sm:$0xff]
        %449 = vset.pattern.permute.xlu0 0
        %450 = vperm.xlu0 %449, %v447
        %v451 = vpop.permute.xlu0 %450
        %vm453 = vcmask 261120
        %v455 = vsel %vm453, %v446, 0
        %457 = vmatprep.subr.mxu0 0.0
        %458 = vmatpush1.msra.mxu0 %v442
        %459 = vmatprep.subr.mxu0 0.0
        %460 = vmatpush1.msra.mxu0 %v443
        %461 = vmatprep.subr.mxu0 0.0
        %462 = vmatpush1.msra.mxu0 %v444
        %463 = vmatprep.subr.mxu0 0.0
        %464 = vmatpush1.msra.mxu0 %v445
        %465 = vmatprep.subr.mxu0 0.0
        %466 = vmatpush1.msra.mxu0 0.0
        %467 = vmatprep.subr.mxu0 0.0
        %468 = vmatpush1.msra.mxu0 0.0
        %469 = vmatprep.subr.mxu0 0.0
        %470 = vmatpush1.msra.mxu0 0.0
        %471 = vmatprep.subr.mxu0 0.0
        %472 = vmatpush1.msra.mxu0 0.0
        %473 = vmatprep.subr.mxu0 0.0
        %474 = vmatpush1.msra.mxu0 0.0
        %475 = vmatprep.subr.mxu0 0.0
        %476 = vmatpush1.msra.mxu0 0.0
        %477 = vmatprep.subr.mxu0 0.0
        %478 = vmatpush1.msra.mxu0 0.0
        %479 = vmatprep.subr.mxu0 0.0
        %480 = vmatpush1.msra.mxu0 0.0
        %481 = vmatprep.subr.mxu0 0.0
        %482 = vmatpush1.msra.mxu0 0.0
        %483 = vmatprep.subr.mxu0 0.0
        %484 = vmatpush1.msra.mxu0 0.0
        %485 = vmatprep.subr.mxu0 0.0
        %486 = vmatpush1.msra.mxu0 0.0
        %487 = vmatprep.subr.mxu0 0.0
        %488 = vmatpush1.msra.mxu0 0.0
        %489 = vmatprep.subr.mxu0 0.0
        %490 = vmatpush1.msra.mxu0 0.0
        %491 = vmatprep.subr.mxu0 0.0
        %492 = vmatpush1.msra.mxu0 0.0
        %493 = vmatprep.subr.mxu0 0.0
        %494 = vmatpush1.msra.mxu0 0.0
        %495 = vmatprep.subr.mxu0 0.0
        %496 = vmatpush1.msra.mxu0 0.0
        %497 = vmatprep.subr.mxu0 0.0
        %498 = vmatpush1.msra.mxu0 0.0
        %499 = vmatprep.subr.mxu0 0.0
        %500 = vmatpush1.msra.mxu0 0.0
        %501 = vmatprep.subr.mxu0 0.0
        %502 = vmatpush1.msra.mxu0 0.0
        %503 = vmatprep.subr.mxu0 0.0
        %504 = vmatpush1.msra.mxu0 0.0
        %505 = vmatprep.subr.mxu0 0.0
        %506 = vmatpush1.msra.mxu0 0.0
        %507 = vmatprep.subr.mxu0 0.0
        %508 = vmatpush1.msra.mxu0 0.0
        %509 = vmatprep.subr.mxu0 0.0
        %510 = vmatpush1.msra.mxu0 0.0
        %511 = vmatprep.subr.mxu0 0.0
        %512 = vmatpush1.msra.mxu0 0.0
        %513 = vmatprep.subr.mxu0 0.0
        %514 = vmatpush1.msra.mxu0 0.0
        %515 = vmatprep.subr.mxu0 0.0
        %516 = vmatpush1.msra.mxu0 0.0
        %517 = vmatprep.subr.mxu0 0.0
        %518 = vmatpush1.msra.mxu0 0.0
        %519 = vmatprep.subr.mxu0 0.0
        %520 = vmatpush1.msra.mxu0 0.0
        %521 = vmatprep.mubr.f32.mxu0 0.0
        %522 = vmatmul.mubr.f32.gmra.mrb[0].mxu0 %v455
        %v523 = vpop.f32.mrb[0].mxu0
        %v524 = vadd.f32 %v451, %v523
        %v525 = vpop.f32.mrb[0].mxu0
        %526 = vdwg.mxu0
        %v527 = vstv %s275
        %v528 = vmul.f32 %v527, %v282
        %v529 = vstv %s277
        %v530 = vmul.f32 %v529, %v524
        %v531 = vadd.f32 %v528, %v530
        %v532 = vld [vmem:[%s268] sm:$0xff]
        %v533 = vstv %s279
        %v534 = vmul.f32 %v533, %v532
        %v535 = vadd.f32 %v531, %v534
        %v536 = vmax.f32 %v535, -1.0
        %v537 = vmin.f32 %v536, 1.0
        %538 = vst [vmem:[#allocation4] sm:$0xff] %v537
        // Predicated region
        $region53: #{tpu_custom_call.1} parent=47 // pred_check
          %p539 = pneg %p191
        $region54: #{tpu_custom_call.1} parent=47 // pred_check_branch
          %541 = sbr.rel (%p539) target = $region56
        $region55: #{tpu_custom_call.1} parent=47 // pred_region
          %s543 = ssub.s32 128, 128
          %544 = vsyncadd [#allocation5], %s543
          %s546 = sshll.u32 [#allocation4], 4
          %s547 = int_to_ptr.vmem [resolvable:$true] %s546
          %549 = dma.vmem_to_hbm [thread:$0]  %s547, 128, %s8, [#allocation5]
        $region56: #{tpu_custom_call.1} parent=47 // pred_fallthru
          _
        // Predicated region
        $region57: #{tpu_custom_call.1} parent=47 // pred_check
          %p550 = pneg %p191
        $region58: #{tpu_custom_call.1} parent=47 // pred_check_branch
          %552 = sbr.rel (%p550) target = $region60
        $region59: #{tpu_custom_call.1} parent=47 // pred_region
          %553 = dma.done [#allocation5], 128
        $region60: #{tpu_custom_call.1} parent=47 // pred_fallthru
          _
      $region48: #{tpu_custom_call.1} parent=5 // pred_fallthru
        _
      %p554 = scmp.le.s32.totalorder 2, %s21
      // Predicated region
      $region61: #{tpu_custom_call.1} parent=5 // pred_check
        %p555 = pneg %p554
      $region62: #{tpu_custom_call.1} parent=5 // pred_check_branch
        %557 = sbr.rel (%p555) target = $region64
      $region63: #{tpu_custom_call.1} parent=5 // pred_region
        %s558 = ssub.s32 %s21, 2
      $region64: #{tpu_custom_call.1} parent=5 // pred_fallthru
        _
    $region6: #{tpu_custom_call.1} parent=1 // loop_footer
      %s25 = sadd.s32 1, %s21
    $region7: #{tpu_custom_call.1} parent=1 // loop_footer_branch
      %20 = sbr.rel target = $region3
    $region8: #{tpu_custom_call.1} parent=1 // loop_exit
      _
    %559 = vsyncpa [#allocation5], 1
    %s560 = scalar_lea.sflag [#allocation5], 1
    %561 = vsyncpa %s560, 1

</llo_original>
